<compile_context>
chip_gen: v7x
topology: tpu7x:2x2x1
jax: 0.10.0
libtpu: 0.0.40
codegen_flags: <defaults>
</compile_context>

<pallas_src>
import functools

import jax
import jax.numpy as jnp
from jax import lax
from jax.experimental import pallas as pl
from jax.experimental.pallas import tpu as pltpu


# ----------------------------- helpers ------------------------------------ #

def _round_up(x, m):
    return (x + m - 1) // m * m


def _spatial_tile(hw, bytes_per_pos, target_bytes):
    """Largest multiple-of-128 divisor of `hw` whose block fits target_bytes.

    Falls back to the whole axis when hw is not 128-aligned (single tile).
    """
    if hw % 128 != 0:
        return hw
    best = 128
    for cand in range(128, hw + 1, 128):
        if hw % cand == 0 and cand * bytes_per_pos <= target_bytes:
            best = cand
    return best


def _vmem_limit(nbytes):
    # Actual block bytes + headroom, floored at 8 MiB, capped at v7x capacity.
    return int(min(max(nbytes + (2 << 20), 8 << 20), 64 << 20))


# ----------------------------- kernels ------------------------------------ #

def conv_stats_kernel(slab_ref, w_ref, y_ref, sum_ref, sq_ref, *, cout):
    # slab_ref : (1, THW, Kp)   im2col patches (+ bias ones-column, zero pad)
    # w_ref    : (Kp, Cp)       weights reshaped to (K*K*Cin [+bias], Cout), padded
    # y_ref    : (1, Cout, THW) conv output (pre-BN), channels on sublanes
    # sum_ref  : (1, 1, 1, Cp)  per-grid-step partial channel sum
    # sq_ref   : (1, 1, 1, Cp)  per-grid-step partial channel sum-of-squares

    # Single wide-contraction MXU pass (im2col); accumulate in f32.
    acc = jnp.dot(slab_ref[0], w_ref[...],
                  preferred_element_type=jnp.float32)          # (THW, Cp) f32

    # Fused BatchNorm batch statistics (training mode), one block per grid
    # step so the grid axes stay "parallel" (megacore-friendly).
    sum_ref[...] = jnp.sum(acc, axis=0, keepdims=True).reshape(sum_ref.shape)
    sq_ref[...] = jnp.sum(acc * acc, axis=0, keepdims=True).reshape(sq_ref.shape)

    # Store channel-major so the intermediate is Cout (not Cp) wide in HBM and
    # the wrapper's final NCHW reshape is free (no unpad/transpose pass).
    y_ref[0] = jnp.transpose(acc)[:cout, :]


def bn_apply_kernel(y_ref, scale_ref, shift_ref, o_ref):
    # y_ref/o_ref : (1, Cout, THW)   channel-major tile (lane-dense spatial)
    # scale/shift : (1, Cout, 1)     per-channel affine, broadcast along lanes
    o_ref[...] = y_ref[...] * scale_ref[...] + shift_ref[...]


# ----------------------------- wrapper ------------------------------------ #

def conv_block_forward(x_nchw, w, b, gamma, beta, *, stride=1, padding=0,
                       eps=1e-5, matmul_dtype=jnp.float32):
    """ConvBlock forward: BatchNorm2d(Conv2d(x)), training-mode batch stats.

    x_nchw : (N, C_in, H, W) float32
    w      : (K, K, C_in, C_out)
    b      : (C_out,)
    gamma, beta : (C_out,)
    matmul_dtype: jnp.float32 (default) or jnp.bfloat16 (recommended v6e/v7x).
    Returns (N, C_out, H_out, W_out) float32.
    """
    N, Cin, H, W = x_nchw.shape
    K = w.shape[0]
    Cout = w.shape[-1]
    S, P = stride, padding
    Ho = (H + 2 * P - K) // S + 1
    Wo = (W + 2 * P - K) // S + 1
    HoWo = Ho * Wo

    KKC = K * K * Cin
    Kp = _round_up(KKC + 1, 128)          # +1: ones-column carrying the conv bias
    Cp = _round_up(Cout, 128)

    # ---- im2col in the wrapper (layout plumbing; XLA fuses the slices) ----
    x = jnp.transpose(x_nchw, (0, 2, 3, 1)).astype(jnp.float32)      # NHWC
    xp = jnp.pad(x, ((0, 0), (P, P), (P, P), (0, 0)))
    pieces = [xp[:, kh:kh + (Ho - 1) * S + 1:S, kw:kw + (Wo - 1) * S + 1:S, :]
              for kh in range(K) for kw in range(K)]
    slab = jnp.concatenate(pieces, axis=-1).reshape(N, HoWo, KKC)
    slab = jnp.concatenate(
        [slab,
         jnp.ones((N, HoWo, 1), jnp.float32),                        # bias col
         jnp.zeros((N, HoWo, Kp - KKC - 1), jnp.float32)], axis=-1)
    slab = slab.astype(matmul_dtype)

    # Weights (K,K,Cin,Cout) -> (K*K*Cin + 1, Cout), column order matches slab.
    w2 = jnp.concatenate([w.reshape(KKC, Cout).astype(jnp.float32),
                          b.reshape(1, Cout).astype(jnp.float32)], axis=0)
    w2 = jnp.pad(w2, ((0, Kp - KKC - 1), (0, Cp - Cout))).astype(matmul_dtype)

    ib = jnp.dtype(matmul_dtype).itemsize

    # ---- 1) convolution (single im2col matmul) + fused BN batch stats ----
    THW = _spatial_tile(HoWo, (Kp + Cp) * ib + Cout * 4, 2 << 20)
    T = HoWo // THW
    conv_vmem = _vmem_limit(
        2 * (THW * Kp * ib + Kp * Cp * ib + Cout * THW * 4 + 2 * 8 * Cp * 4)
        + THW * Cp * 4)

    y, psum, psq = pl.pallas_call(
        functools.partial(conv_stats_kernel, cout=Cout),
        out_shape=(jax.ShapeDtypeStruct((N, Cout, HoWo), jnp.float32),
                   jax.ShapeDtypeStruct((N, T, 1, Cp), jnp.float32),
                   jax.ShapeDtypeStruct((N, T, 1, Cp), jnp.float32)),
        grid_spec=pltpu.PrefetchScalarGridSpec(
            num_scalar_prefetch=0, grid=(N, T),
            in_specs=[
                pl.BlockSpec((1, THW, Kp), lambda n, t: (n, t, 0)),
                pl.BlockSpec((Kp, Cp), lambda n, t: (0, 0)),
            ],
            out_specs=(
                pl.BlockSpec((1, Cout, THW), lambda n, t: (n, 0, t)),
                pl.BlockSpec((1, 1, 1, Cp), lambda n, t: (n, t, 0, 0)),
                pl.BlockSpec((1, 1, 1, Cp), lambda n, t: (n, t, 0, 0)),
            )),
        compiler_params=pltpu.CompilerParams(
            dimension_semantics=("parallel", "parallel"),
            vmem_limit_bytes=conv_vmem),
    )(slab, w2)

    # ---- per-channel scalar math (tiny) in plain JAX ----
    count = jnp.float32(N * HoWo)
    ch_sum = jnp.sum(psum, axis=(0, 1, 2))[:Cout]
    ch_sq = jnp.sum(psq, axis=(0, 1, 2))[:Cout]
    mean = ch_sum / count
    var = jnp.maximum(ch_sq / count - mean * mean, 0.0)   # clamp: cancellation
    inv_std = lax.rsqrt(var + eps)
    scale = gamma.astype(jnp.float32) * inv_std
    shift = beta.astype(jnp.float32) - mean * scale
    scale = scale.reshape(1, Cout, 1)
    shift = shift.reshape(1, Cout, 1)

    # ---- 2) BN apply: elementwise, in place over y, lane-dense spatial tiles ----
    THW2 = _spatial_tile(HoWo, 2 * Cout * 4, 2 << 20)
    T2 = HoWo // THW2
    bn_vmem = _vmem_limit(2 * (2 * Cout * THW2 * 4 + 2 * 8 * 128 * 4))

    out = pl.pallas_call(
        bn_apply_kernel,
        out_shape=jax.ShapeDtypeStruct((N, Cout, HoWo), jnp.float32),
        grid_spec=pltpu.PrefetchScalarGridSpec(
            num_scalar_prefetch=0, grid=(N, T2),
            in_specs=[
                pl.BlockSpec((1, Cout, THW2), lambda n, t: (n, 0, t)),
                pl.BlockSpec((1, Cout, 1), lambda n, t: (0, 0, 0)),
                pl.BlockSpec((1, Cout, 1), lambda n, t: (0, 0, 0)),
            ],
            out_specs=pl.BlockSpec((1, Cout, THW2), lambda n, t: (n, 0, t))),
        compiler_params=pltpu.CompilerParams(
            dimension_semantics=("parallel", "parallel"),
            vmem_limit_bytes=bn_vmem),
        input_output_aliases={0: 0},          # write in place over y
    )(y, scale, shift)

    # Free reshape: (N, Cout, Ho*Wo) -> NCHW.
    return out.reshape(N, Cout, Ho, Wo)


# --------------------------- pure-JAX reference ---------------------------- #

def reference_forward(x_nchw, w, b, gamma, beta, *, stride, padding, eps=1e-5):
    # Conv in NCHW like torch; weight (K,K,Cin,Cout) -> (Cout,Cin,K,K).
    w_oihw = jnp.transpose(w, (3, 2, 0, 1))
    y = lax.conv_general_dilated(
        x_nchw, w_oihw, window_strides=(stride, stride),
        padding=[(padding, padding), (padding, padding)],
        dimension_numbers=("NCHW", "OIHW", "NCHW"))
    y = y + b.reshape(1, -1, 1, 1)
    mean = jnp.mean(y, axis=(0, 2, 3), keepdims=True)
    var = jnp.mean((y - mean) ** 2, axis=(0, 2, 3), keepdims=True)
    yhat = (y - mean) * lax.rsqrt(var + eps)
    return yhat * gamma.reshape(1, -1, 1, 1) + beta.reshape(1, -1, 1, 1)


# --------------------------------- main ------------------------------------ #

if __name__ == "__main__":
    root = jax.random.PRNGKey(0)

    def make_inputs(key, N, Cin, H, W, Cout, K):
        k_x, k_w, k_b = jax.random.split(key, 3)
        x = jax.random.normal(k_x, (N, Cin, H, W), jnp.float32)
        fan_in = Cin * K * K
        bound = 1.0 / (fan_in ** 0.5)
        w = jax.random.uniform(k_w, (K, K, Cin, Cout), jnp.float32, -bound, bound)
        b = jax.random.uniform(k_b, (Cout,), jnp.float32, -bound, bound)
        gamma = jnp.ones((Cout,), jnp.float32)   # BatchNorm2d default weight
        beta = jnp.zeros((Cout,), jnp.float32)   # BatchNorm2d default bias
        return x, w, b, gamma, beta

    def check(key, N, Cin, H, W, Cout, K, S, P, matmul_dtype, atol):
        x, w, b, gamma, beta = make_inputs(key, N, Cin, H, W, Cout, K)
        out = conv_block_forward(x, w, b, gamma, beta, stride=S, padding=P,
                                 matmul_dtype=matmul_dtype)
        out = jax.block_until_ready(out)
        ref = reference_forward(x, w, b, gamma, beta, stride=S, padding=P)
        assert out.shape == ref.shape, (out.shape, ref.shape)
        err = float(jnp.max(jnp.abs(out - ref)))
        assert err < atol, (str(matmul_dtype), err)

    k1, k2 = jax.random.split(root)
    # Main config: stride 1, padding 1 (tight f32 check).
    check(k1, 2, 4, 16, 16, 8, 3, 1, 1, jnp.float32, 5e-4)
    # Stride-2 config: exercises the S>1 im2col path (tight f32 check).
    check(k2, 2, 3, 32, 32, 16, 2, 2, 0, jnp.float32, 5e-4)
    # bf16 MXU operands (the v6e/v7x-recommended path), looser tolerance.
    check(k1, 2, 4, 16, 16, 8, 3, 1, 1, jnp.bfloat16, 5e-2)

    print("KERNEL_OK")
</pallas_src>

<mosaic_0001>
module attributes {stable_mosaic.version = 11 : i64} {
  func.func @conv_stats_kernel(%arg0: i32, %arg1: i32, %arg2: memref<1x256x128xf32, #tpu.memory_space<vmem>>, %arg3: memref<128x128xf32, #tpu.memory_space<vmem>>, %arg4: memref<1x8x256xf32, #tpu.memory_space<vmem>>, %arg5: memref<1x1x1x128xf32, #tpu.memory_space<vmem>>, %arg6: memref<1x1x1x128xf32, #tpu.memory_space<vmem>>) attributes {dimension_semantics = [#tpu.dimension_semantics<parallel>, #tpu.dimension_semantics<parallel>], iteration_bounds = array<i64: 2, 1>, scalar_prefetch = 0 : i64, scratch_operands = 0 : i64, tpu.core_type = #tpu.core_type<tc>, window_params = [{transform_indices = @transform_0, window_bounds = array<i64: 1, 256, 128>}, {pipeline_mode = #tpu.pipeline_mode<synchronous>, transform_indices = @transform_1, window_bounds = array<i64: 128, 128>}, {transform_indices = @transform_2, window_bounds = array<i64: 1, 8, 256>}, {transform_indices = @transform_3, window_bounds = array<i64: 1, 1, 1, 128>}, {transform_indices = @transform_4, window_bounds = array<i64: 1, 1, 1, 128>}]} {
    %c0 = arith.constant 0 : index
    %c0_0 = arith.constant 0 : index
    %c0_1 = arith.constant 0 : index
    %0 = vector.load %arg2[%c0, %c0_0, %c0_1] : memref<1x256x128xf32, #tpu.memory_space<vmem>>, vector<1x256x128xf32>
    %1 = vector.shape_cast %0 : vector<1x256x128xf32> to vector<256x128xf32>
    %c0_2 = arith.constant 0 : index
    %c0_3 = arith.constant 0 : index
    %2 = vector.load %arg3[%c0_2, %c0_3] : memref<128x128xf32, #tpu.memory_space<vmem>>, vector<128x128xf32>
    %cst = arith.constant dense<0.000000e+00> : vector<256x128xf32>
    %3 = tpu.matmul %1, %2, %cst {dimension_numbers = #tpu.dot_dimension_numbers<[1], [0], [0], [1], [0, 0, 1, 1], [], []>} : vector<256x128xf32>, vector<128x128xf32>, vector<256x128xf32> -> vector<256x128xf32>
    %cst_4 = arith.constant dense<0.000000e+00> : vector<128xf32>
    %4 = vector.multi_reduction <add>, %3, %cst_4 [0] : vector<256x128xf32> to vector<128xf32>
    %5 = vector.shape_cast %4 : vector<128xf32> to vector<1x128xf32>
    %6 = vector.shape_cast %5 : vector<1x128xf32> to vector<1x1x1x128xf32>
    %c0_5 = arith.constant 0 : index
    %c0_6 = arith.constant 0 : index
    %c0_7 = arith.constant 0 : index
    %c0_8 = arith.constant 0 : index
    %7 = vector.load %arg5[%c0_5, %c0_6, %c0_7, %c0_8] : memref<1x1x1x128xf32, #tpu.memory_space<vmem>>, vector<1x1x1x128xf32>
    tpu.vector_store %arg5[%c0_5, %c0_6, %c0_7, %c0_8], %6 {strides = array<i32>} : memref<1x1x1x128xf32, #tpu.memory_space<vmem>>, vector<1x1x1x128xf32>,
    %8 = arith.mulf %3, %3 : vector<256x128xf32>
    %cst_9 = arith.constant dense<0.000000e+00> : vector<128xf32>
    %9 = vector.multi_reduction <add>, %8, %cst_9 [0] : vector<256x128xf32> to vector<128xf32>
    %10 = vector.shape_cast %9 : vector<128xf32> to vector<1x128xf32>
    %11 = vector.shape_cast %10 : vector<1x128xf32> to vector<1x1x1x128xf32>
    %c0_10 = arith.constant 0 : index
    %c0_11 = arith.constant 0 : index
    %c0_12 = arith.constant 0 : index
    %c0_13 = arith.constant 0 : index
    %12 = vector.load %arg6[%c0_10, %c0_11, %c0_12, %c0_13] : memref<1x1x1x128xf32, #tpu.memory_space<vmem>>, vector<1x1x1x128xf32>
    tpu.vector_store %arg6[%c0_10, %c0_11, %c0_12, %c0_13], %11 {strides = array<i32>} : memref<1x1x1x128xf32, #tpu.memory_space<vmem>>, vector<1x1x1x128xf32>,
    %13 = tpu.transpose %3, [1, 0] : vector<256x128xf32> -> vector<128x256xf32>
    %14 = vector.extract_strided_slice %13 {offsets = [0, 0], sizes = [8, 256], strides = [1, 1]} : vector<128x256xf32> to vector<8x256xf32>
    %c0_14 = arith.constant 0 : index
    %c0_15 = arith.constant 0 : index
    %c0_16 = arith.constant 0 : index
    %15 = vector.load %arg4[%c0_14, %c0_15, %c0_16] : memref<1x8x256xf32, #tpu.memory_space<vmem>>, vector<1x8x256xf32>
    %16 = vector.shape_cast %15 : vector<1x8x256xf32> to vector<8x256xf32>
    %17 = vector.shape_cast %14 : vector<8x256xf32> to vector<1x8x256xf32>
    tpu.vector_store %arg4[%c0_14, %c0_15, %c0_16], %17 {strides = array<i32>} : memref<1x8x256xf32, #tpu.memory_space<vmem>>, vector<1x8x256xf32>,
    return
  }
  func.func @transform_0(%arg0: i32, %arg1: i32) -> (i32, i32, i32) {
    %c0_i32 = arith.constant 0 : i32
    %c0_i32_0 = arith.constant 0 : i32
    return %arg0, %arg1, %c0_i32 : i32, i32, i32
  }
  func.func @transform_1(%arg0: i32, %arg1: i32) -> (i32, i32) {
    %c0_i32 = arith.constant 0 : i32
    %c0_i32_0 = arith.constant 0 : i32
    %c0_i32_1 = arith.constant 0 : i32
    return %c0_i32, %c0_i32_0 : i32, i32
  }
  func.func @transform_2(%arg0: i32, %arg1: i32) -> (i32, i32, i32) {
    %c0_i32 = arith.constant 0 : i32
    %c0_i32_0 = arith.constant 0 : i32
    return %arg0, %c0_i32, %arg1 : i32, i32, i32
  }
  func.func @transform_3(%arg0: i32, %arg1: i32) -> (i32, i32, i32, i32) {
    %c0_i32 = arith.constant 0 : i32
    %c0_i32_0 = arith.constant 0 : i32
    %c0_i32_1 = arith.constant 0 : i32
    return %arg0, %arg1, %c0_i32, %c0_i32_0 : i32, i32, i32, i32
  }
  func.func @transform_4(%arg0: i32, %arg1: i32) -> (i32, i32, i32, i32) {
    %c0_i32 = arith.constant 0 : i32
    %c0_i32_0 = arith.constant 0 : i32
    %c0_i32_1 = arith.constant 0 : i32
    return %arg0, %arg1, %c0_i32, %c0_i32_0 : i32, i32, i32, i32
  }
}

</mosaic_0001>

<llo_original>
// kernel: tpu_custom_call.1
$region0: #{tpu_custom_call.1}
  #allocation0 [shape = 'u32[]', space=smem, size = 0x4, offset = 0x4, fixed_abs, tag = 'smem constant byte address 0x4 - core index']
  #allocation1 [shape = 'u32[144,128]{1,0:T(1,128)}', space=vmem, size = 0x12000, scoped, tag = 'internal scratch']
  %s0 = inlined_call_operand.hbm [shape: f32[2,256,128], index: 0, kind: input, shape index: {}]
  %s1 = inlined_call_operand.hbm [shape: f32[128,128], index: 1, kind: input, shape index: {}]
  %s2 = inlined_call_operand.hbm [shape: f32[2,8,256], index: 2, kind: output, shape index: {0}]
  %s3 = inlined_call_operand.hbm [shape: f32[2,1,1,128], index: 3, kind: output, shape index: {1}]
  %s4 = inlined_call_operand.hbm [shape: f32[2,1,1,128], index: 4, kind: output, shape index: {2}]
  %5 = xla_tuple %s2, %s3, %s4
  %s6 = sld [smem:[#allocation0]]
  $region65: #{tpu_custom_call.1} parent=0
    _
  %s8 = ssub.s32 1, %s6
  %s9 = scalar_select 0, %s8, %s6
  $region1: #{tpu_custom_call.1} parent=0
    #allocation2 [shape = 'u8[262144]{0}', space=vmem, size = 0x40000, scoped, tag = 'input window, operand 0']
    #allocation3 [shape = 's32[2]{0}', space=sflag, size = 0x8, scoped, tag = 'scoped memory for tpu_custom_call.1']
    #allocation4 [shape = 's32[2]{0}', space=sflag, size = 0x8, scoped, tag = 'scoped memory for tpu_custom_call.1']
    #allocation5 [shape = 'u8[65536]{0}', space=vmem, size = 0x10000, scoped, tag = 'input window, operand 1, single buffered']
    #allocation6 [shape = 's32[1]{0}', space=sflag, size = 0x4, scoped, tag = 'scoped memory for tpu_custom_call.1']
    #allocation7 [shape = 'u8[16384]{0}', space=vmem, size = 0x4000, scoped, tag = 'output window, operand 0']
    #allocation8 [shape = 'u8[1024]{0}', space=vmem, size = 0x400, scoped, tag = 'output window, operand 1']
    #allocation9 [shape = 's32[2]{0}', space=sflag, size = 0x8, scoped, tag = 'scoped memory for tpu_custom_call.1']
    #allocation10 [shape = 'u8[1024]{0}', space=vmem, size = 0x400, scoped, tag = 'output window, operand 2']
    %10 = vsyncpa [#allocation3], 0
    %s11 = scalar_lea.sflag [#allocation3], 1
    %12 = vsyncpa %s11, 0
    %13 = vsyncpa [#allocation6], 0
    %14 = vsyncpa [#allocation4], 0
    %s15 = scalar_lea.sflag [#allocation4], 1
    %16 = vsyncpa %s15, 0
    %17 = vsyncpa [#allocation9], 0
    %s18 = scalar_lea.sflag [#allocation9], 1
    %19 = vsyncpa %s18, 0
    loop: start=0, step=1, limit=4
    $region2: #{tpu_custom_call.1} parent=1 // loop_pre_header
      _
    $region3: #{tpu_custom_call.1} parent=1 // loop_header
      %s21 = sphi 0, %s25
      %p22 = scmp.ge.s32.totalorder %s21, 4
      %s28 = sphi 0, %s40
      %s29 = sphi 0, %s36
      %s30 = sphi 0, %s28
      %s31 = sphi 0, %s29
      %s32 = sphi 0, %s30
      %s33 = sphi 0, %s31
      %s45 = sphi 0, %s47
      %s48 = sphi 0, %s45
      %s49 = sphi 0, %s48
      %s65 = sphi 0, %s49
      %s69 = sphi 0, %s69
      %s71 = sphi 0, %s69
      %s72 = sphi 0, %s71
      %s86 = sphi 0, %s72
      %s94 = sphi 0, %s96
      %s97 = sphi 0, %s94
      %s98 = sphi 0, %s97
      %s114 = sphi 0, %s98
      %s122 = sphi 0, %s124
      %s125 = sphi 0, %s122
      %s126 = sphi 0, %s125
      %s142 = sphi 0, %s126
      %s150 = sphi 0, %s152
      %s153 = sphi 0, %s150
      %s154 = sphi 0, %s153
      %s170 = sphi 0, %s154
    $region4: #{tpu_custom_call.1} parent=1 // loop_header_branch
      %24 = sbr.rel (%p22) target = $region8
    $region5: #{tpu_custom_call.1} parent=1 // loop_body
      %s26 = ssub.s32 %s21, 1
      %s27 = ssub.s32 %s21, 2
      %s34 = sadd.s32 1, %s29
      %p35 = scmp.ge.s32.totalorder %s34, 1
      %s36 = scalar_select %p35, 0, %s34
      %s37 = sadd.s32 1, %s28
      %s38 = scalar_select %p35, %s37, %s28
      %p39 = scmp.ge.s32.totalorder %s38, 2
      %s40 = scalar_select %p39, 0, %s38
      %s41 = ssub.s32 %s28, %s40
      %s42 = ssub.s32 %s29, %s36
      %s43 = sor.u32 %s41, %s42
      %p44 = scmp.eq.s32.totalorder %s43, 0
      %s46 = sadd.s32 %s45, 1
      %s47 = scalar_select %p44, %s45, %s46
      %p50 = pneg %p44
      %p51 = scmp.eq.s32.totalorder %s21, 1
      %p52 = por %p50, %p51
      %p53 = scmp.ne.s32.totalorder %s45, %s48
      %p54 = scmp.eq.s32.totalorder %s21, 0
      %p55 = por %p53, %p54
      %p56 = scmp.ne.s32.totalorder %s45, %s48
      %p57 = scmp.eq.s32.totalorder %s26, 1
      %p58 = por %p56, %p57
      %p59 = scmp.ne.s32.totalorder %s48, %s49
      %p60 = scmp.eq.s32.totalorder %s26, 0
      %p61 = por %p59, %p60
      %p62 = scmp.ne.s32.totalorder %s48, %s49
      %p63 = scmp.eq.s32.totalorder %s27, 1
      %p64 = por %p62, %p63
      %p66 = scmp.ne.s32.totalorder %s49, %s65
      %p67 = scmp.eq.s32.totalorder %s27, 0
      %p68 = por %p66, %p67
      %s70 = sadd.s32 %s69, 1
      %p73 = scmp.eq.s32.totalorder %s21, 1
      %p74 = scmp.ne.s32.totalorder %s69, %s71
      %p75 = scmp.eq.s32.totalorder %s21, 0
      %p76 = por %p74, %p75
      %p77 = scmp.ne.s32.totalorder %s69, %s71
      %p78 = scmp.eq.s32.totalorder %s26, 1
      %p79 = por %p77, %p78
      %p80 = scmp.ne.s32.totalorder %s71, %s72
      %p81 = scmp.eq.s32.totalorder %s26, 0
      %p82 = por %p80, %p81
      %p83 = scmp.ne.s32.totalorder %s71, %s72
      %p84 = scmp.eq.s32.totalorder %s27, 1
      %p85 = por %p83, %p84
      %p87 = scmp.ne.s32.totalorder %s72, %s86
      %p88 = scmp.eq.s32.totalorder %s27, 0
      %p89 = por %p87, %p88
      %s90 = ssub.s32 %s28, %s40
      %s91 = ssub.s32 %s29, %s36
      %s92 = sor.u32 %s90, %s91
      %p93 = scmp.eq.s32.totalorder %s92, 0
      %s95 = sadd.s32 %s94, 1
      %s96 = scalar_select %p93, %s94, %s95
      %p99 = pneg %p93
      %p100 = scmp.eq.s32.totalorder %s21, 1
      %p101 = por %p99, %p100
      %p102 = scmp.ne.s32.totalorder %s94, %s97
      %p103 = scmp.eq.s32.totalorder %s21, 0
      %p104 = por %p102, %p103
      %p105 = scmp.ne.s32.totalorder %s94, %s97
      %p106 = scmp.eq.s32.totalorder %s26, 1
      %p107 = por %p105, %p106
      %p108 = scmp.ne.s32.totalorder %s97, %s98
      %p109 = scmp.eq.s32.totalorder %s26, 0
      %p110 = por %p108, %p109
      %p111 = scmp.ne.s32.totalorder %s97, %s98
      %p112 = scmp.eq.s32.totalorder %s27, 1
      %p113 = por %p111, %p112
      %p115 = scmp.ne.s32.totalorder %s98, %s114
      %p116 = scmp.eq.s32.totalorder %s27, 0
      %p117 = por %p115, %p116
      %s118 = ssub.s32 %s28, %s40
      %s119 = ssub.s32 %s29, %s36
      %s120 = sor.u32 %s118, %s119
      %p121 = scmp.eq.s32.totalorder %s120, 0
      %s123 = sadd.s32 %s122, 1
      %s124 = scalar_select %p121, %s122, %s123
      %p127 = pneg %p121
      %p128 = scmp.eq.s32.totalorder %s21, 1
      %p129 = por %p127, %p128
      %p130 = scmp.ne.s32.totalorder %s122, %s125
      %p131 = scmp.eq.s32.totalorder %s21, 0
      %p132 = por %p130, %p131
      %p133 = scmp.ne.s32.totalorder %s122, %s125
      %p134 = scmp.eq.s32.totalorder %s26, 1
      %p135 = por %p133, %p134
      %p136 = scmp.ne.s32.totalorder %s125, %s126
      %p137 = scmp.eq.s32.totalorder %s26, 0
      %p138 = por %p136, %p137
      %p139 = scmp.ne.s32.totalorder %s125, %s126
      %p140 = scmp.eq.s32.totalorder %s27, 1
      %p141 = por %p139, %p140
      %p143 = scmp.ne.s32.totalorder %s126, %s142
      %p144 = scmp.eq.s32.totalorder %s27, 0
      %p145 = por %p143, %p144
      %s146 = ssub.s32 %s28, %s40
      %s147 = ssub.s32 %s29, %s36
      %s148 = sor.u32 %s146, %s147
      %p149 = scmp.eq.s32.totalorder %s148, 0
      %s151 = sadd.s32 %s150, 1
      %s152 = scalar_select %p149, %s150, %s151
      %p155 = pneg %p149
      %p156 = scmp.eq.s32.totalorder %s21, 1
      %p157 = por %p155, %p156
      %p158 = scmp.ne.s32.totalorder %s150, %s153
      %p159 = scmp.eq.s32.totalorder %s21, 0
      %p160 = por %p158, %p159
      %p161 = scmp.ne.s32.totalorder %s150, %s153
      %p162 = scmp.eq.s32.totalorder %s26, 1
      %p163 = por %p161, %p162
      %p164 = scmp.ne.s32.totalorder %s153, %s154
      %p165 = scmp.eq.s32.totalorder %s26, 0
      %p166 = por %p164, %p165
      %p167 = scmp.ne.s32.totalorder %s153, %s154
      %p168 = scmp.eq.s32.totalorder %s27, 1
      %p169 = por %p167, %p168
      %p171 = scmp.ne.s32.totalorder %s154, %s170
      %p172 = scmp.eq.s32.totalorder %s27, 0
      %p173 = por %p171, %p172
      %p174 = scmp.le.s32.totalorder 1, %s21
      %p175 = scmp.lt.s32.totalorder %s21, 3
      %p176 = pnand %p174, %p175
      %p177 = pneg %p176
      // Predicated region
      $region9: #{tpu_custom_call.1} parent=5 // pred_check
        _
      $region10: #{tpu_custom_call.1} parent=5 // pred_check_branch
        %179 = sbr.rel (%p176) target = $region12
      $region11: #{tpu_custom_call.1} parent=5 // pred_region
        %s180 = ssub.s32 %s21, 1
        // Predicated region
        $region13: #{tpu_custom_call.1} parent=11 // pred_check
          %p181 = pneg %p82
        $region14: #{tpu_custom_call.1} parent=11 // pred_check_branch
          %183 = sbr.rel (%p181) target = $region16
        $region15: #{tpu_custom_call.1} parent=11 // pred_region
          %s185 = ssub.s32 2048, 2048
          %186 = vsyncadd [#allocation6], %s185
          %s187 = sshll.u32 [#allocation5], 4
          %s188 = int_to_ptr.vmem [resolvable:$true] %s187
          %193 = dma.hbm_to_vmem [thread:$0]  %s1, 2048, %s188, [#allocation6], 128, 128, 8
        $region16: #{tpu_custom_call.1} parent=11 // pred_fallthru
          _
      $region12: #{tpu_custom_call.1} parent=5 // pred_fallthru
        _
      %p194 = scmp.lt.s32.totalorder %s21, 2
      // Predicated region
      $region17: #{tpu_custom_call.1} parent=5 // pred_check
        %p195 = pneg %p194
      $region18: #{tpu_custom_call.1} parent=5 // pred_check_branch
        %197 = sbr.rel (%p195) target = $region20
      $region19: #{tpu_custom_call.1} parent=5 // pred_region
        // Predicated region
        $region21: #{tpu_custom_call.1} parent=19 // pred_check
          %p198 = pneg %p55
        $region22: #{tpu_custom_call.1} parent=19 // pred_check_branch
          %200 = sbr.rel (%p198) target = $region24
        $region23: #{tpu_custom_call.1} parent=19 // pred_region
          %s201 = sand.u32 %s45, 1
          %s202 = scalar_lea.sflag [#allocation3], %s201
          %s203 = sand.u32 %s45, 1
          %s204 = smul.addr %s203, 256
          %s205 = scalar_lea.vmem [#allocation2], %s204
          %s206 = smul.u32 32, %s29
          %s208 = ssub.s32 4096, 4096
          %209 = vsyncadd %s202, %s208
          %s210 = smul.addr %s28, 32
          %s211 = sadd.s32 %s206, %s210
          %s212 = smul.addr %s211, 128
          %s213 = scalar_lea.hbm %s0, %s212
          %s214 = sshll.u32 %s205, 4
          %s215 = int_to_ptr.vmem [resolvable:$true] %s214
          %220 = dma.hbm_to_vmem [thread:$0]  %s213, 4096, %s215, %s202, 128, 128, 8
        $region24: #{tpu_custom_call.1} parent=19 // pred_fallthru
          _
      $region20: #{tpu_custom_call.1} parent=5 // pred_fallthru
        _
      %p221 = scmp.le.s32.totalorder 1, %s21
      %p222 = scmp.lt.s32.totalorder %s21, 3
      %p223 = pnand %p221, %p222
      %p224 = pneg %p223
      // Predicated region
      $region25: #{tpu_custom_call.1} parent=5 // pred_check
        _
      $region26: #{tpu_custom_call.1} parent=5 // pred_check_branch
        %226 = sbr.rel (%p223) target = $region28
      $region27: #{tpu_custom_call.1} parent=5 // pred_region
        %s227 = ssub.s32 %s21, 1
        %s228 = sand.u32 %s48, 1
        %s229 = scalar_lea.sflag [#allocation3], %s228
        %s230 = sand.u32 %s48, 1
        %s231 = smul.addr %s230, 256
        %s232 = scalar_lea.vmem [#allocation2], %s231
        // Predicated region
        $region29: #{tpu_custom_call.1} parent=27 // pred_check
          %p233 = pneg %p61
        $region30: #{tpu_custom_call.1} parent=27 // pred_check_branch
          %235 = sbr.rel (%p233) target = $region32
        $region31: #{tpu_custom_call.1} parent=27 // pred_region
          %236 = dma.done %s229, 4096
        $region32: #{tpu_custom_call.1} parent=27 // pred_fallthru
          _
        // Predicated region
        $region33: #{tpu_custom_call.1} parent=27 // pred_check
          %p237 = pneg %p82
        $region34: #{tpu_custom_call.1} parent=27 // pred_check_branch
          %239 = sbr.rel (%p237) target = $region36
        $region35: #{tpu_custom_call.1} parent=27 // pred_region
          %240 = dma.done [#allocation6], 2048
        $region36: #{tpu_custom_call.1} parent=27 // pred_fallthru
          _
        %s241 = sand.u32 %s48, 1
        %s242 = scalar_lea.sflag [#allocation3], %s241
        %s243 = sand.u32 %s48, 1
        %s244 = smul.addr %s243, 256
        %s245 = scalar_lea.vmem [#allocation2], %s244
        %p246 = pneg %p61
        %p247 = pneg %p58
        %p248 = pneg %p82
        %p249 = pneg %p79
        %p250 = pneg %p110
        %p251 = pneg %p107
        %s252 = sand.u32 %s97, 1
        %s253 = scalar_lea.sflag [#allocation4], %s252
        %s254 = sand.u32 %s97, 1
        %s255 = smul.addr %s254, 16
        %s256 = scalar_lea.vmem [#allocation7], %s255
        %p257 = pneg %p138
        %p258 = pneg %p135
        %s259 = sand.u32 %s26, 1
        %s260 = scalar_lea.sflag [#allocation9], %s259
        %s261 = sand.u32 %s125, 1
        %s262 = scalar_lea.vmem [#allocation8], %s261
        %p263 = pneg %p166
        %p264 = pneg %p163
        %s265 = sand.u32 %s26, 1
        %s266 = scalar_lea.sflag [#allocation9], %s265
        %s267 = sand.u32 %s153, 1
        %s268 = scalar_lea.vmem [#allocation10], %s267
        %s269 = smul.u32 32, %s31
        %s270 = smul.u32 2, %s31
        %v271 = vld [vmem:[%s232] sm:$0xff]
        %v272 = vld [vmem:[%s232 + $0x8] sm:$0xff]
        %v273 = vld [vmem:[%s232 + $0x10] sm:$0xff]
        %v274 = vld [vmem:[%s232 + $0x18] sm:$0xff]
        %v275 = vld [vmem:[%s232 + $0x20] sm:$0xff]
        %v276 = vld [vmem:[%s232 + $0x28] sm:$0xff]
        %v277 = vld [vmem:[%s232 + $0x30] sm:$0xff]
        %v278 = vld [vmem:[%s232 + $0x38] sm:$0xff]
        %v279 = vld [vmem:[%s232 + $0x40] sm:$0xff]
        %v280 = vld [vmem:[%s232 + $0x48] sm:$0xff]
        %v281 = vld [vmem:[%s232 + $0x50] sm:$0xff]
        %v282 = vld [vmem:[%s232 + $0x58] sm:$0xff]
        %v283 = vld [vmem:[%s232 + $0x60] sm:$0xff]
        %v284 = vld [vmem:[%s232 + $0x68] sm:$0xff]
        %v285 = vld [vmem:[%s232 + $0x70] sm:$0xff]
        %v286 = vld [vmem:[%s232 + $0x78] sm:$0xff]
        %v287 = vld [vmem:[%s232 + $0x80] sm:$0xff]
        %v288 = vld [vmem:[%s232 + $0x88] sm:$0xff]
        %v289 = vld [vmem:[%s232 + $0x90] sm:$0xff]
        %v290 = vld [vmem:[%s232 + $0x98] sm:$0xff]
        %v291 = vld [vmem:[%s232 + $0xa0] sm:$0xff]
        %v292 = vld [vmem:[%s232 + $0xa8] sm:$0xff]
        %v293 = vld [vmem:[%s232 + $0xb0] sm:$0xff]
        %v294 = vld [vmem:[%s232 + $0xb8] sm:$0xff]
        %v295 = vld [vmem:[%s232 + $0xc0] sm:$0xff]
        %v296 = vld [vmem:[%s232 + $0xc8] sm:$0xff]
        %v297 = vld [vmem:[%s232 + $0xd0] sm:$0xff]
        %v298 = vld [vmem:[%s232 + $0xd8] sm:$0xff]
        %v299 = vld [vmem:[%s232 + $0xe0] sm:$0xff]
        %v300 = vld [vmem:[%s232 + $0xe8] sm:$0xff]
        %v301 = vld [vmem:[%s232 + $0xf0] sm:$0xff]
        %v302 = vld [vmem:[%s232 + $0xf8] sm:$0xff]
        %v303 = vld [vmem:[#allocation5] sm:$0xff]
        %v304 = vld [vmem:[#allocation5 + $0x8] sm:$0xff]
        %v305 = vld [vmem:[#allocation5 + $0x10] sm:$0xff]
        %v306 = vld [vmem:[#allocation5 + $0x18] sm:$0xff]
        %v307 = vld [vmem:[#allocation5 + $0x20] sm:$0xff]
        %v308 = vld [vmem:[#allocation5 + $0x28] sm:$0xff]
        %v309 = vld [vmem:[#allocation5 + $0x30] sm:$0xff]
        %v310 = vld [vmem:[#allocation5 + $0x38] sm:$0xff]
        %v311 = vld [vmem:[#allocation5 + $0x40] sm:$0xff]
        %v312 = vld [vmem:[#allocation5 + $0x48] sm:$0xff]
        %v313 = vld [vmem:[#allocation5 + $0x50] sm:$0xff]
        %v314 = vld [vmem:[#allocation5 + $0x58] sm:$0xff]
        %v315 = vld [vmem:[#allocation5 + $0x60] sm:$0xff]
        %v316 = vld [vmem:[#allocation5 + $0x68] sm:$0xff]
        %v317 = vld [vmem:[#allocation5 + $0x70] sm:$0xff]
        %v318 = vld [vmem:[#allocation5 + $0x78] sm:$0xff]
        %319 = vmatprep.subr.mxu0 0.0
        %320 = vmatpush1.msra.mxu0 %v303
        %321 = vmatprep.subr.mxu0 0.0
        %322 = vmatpush1.msra.mxu0 %v304
        %323 = vmatprep.subr.mxu0 0.0
        %324 = vmatpush1.msra.mxu0 %v305
        %325 = vmatprep.subr.mxu0 0.0
        %326 = vmatpush1.msra.mxu0 %v306
        %327 = vmatprep.subr.mxu0 0.0
        %328 = vmatpush1.msra.mxu0 %v307
        %329 = vmatprep.subr.mxu0 0.0
        %330 = vmatpush1.msra.mxu0 %v308
        %331 = vmatprep.subr.mxu0 0.0
        %332 = vmatpush1.msra.mxu0 %v309
        %333 = vmatprep.subr.mxu0 0.0
        %334 = vmatpush1.msra.mxu0 %v310
        %335 = vmatprep.subr.mxu0 0.0
        %336 = vmatpush1.msra.mxu0 %v311
        %337 = vmatprep.subr.mxu0 0.0
        %338 = vmatpush1.msra.mxu0 %v312
        %339 = vmatprep.subr.mxu0 0.0
        %340 = vmatpush1.msra.mxu0 %v313
        %341 = vmatprep.subr.mxu0 0.0
        %342 = vmatpush1.msra.mxu0 %v314
        %343 = vmatprep.subr.mxu0 0.0
        %344 = vmatpush1.msra.mxu0 %v315
        %345 = vmatprep.subr.mxu0 0.0
        %346 = vmatpush1.msra.mxu0 %v316
        %347 = vmatprep.subr.mxu0 0.0
        %348 = vmatpush1.msra.mxu0 %v317
        %349 = vmatprep.subr.mxu0 0.0
        %350 = vmatpush1.msra.mxu0 %v318
        %351 = vmatprep.subr.mxu0 0.0
        %352 = vmatpush1.msra.mxu0 0.0
        %353 = vmatprep.subr.mxu0 0.0
        %354 = vmatpush1.msra.mxu0 0.0
        %355 = vmatprep.subr.mxu0 0.0
        %356 = vmatpush1.msra.mxu0 0.0
        %357 = vmatprep.subr.mxu0 0.0
        %358 = vmatpush1.msra.mxu0 0.0
        %359 = vmatprep.subr.mxu0 0.0
        %360 = vmatpush1.msra.mxu0 0.0
        %361 = vmatprep.subr.mxu0 0.0
        %362 = vmatpush1.msra.mxu0 0.0
        %363 = vmatprep.subr.mxu0 0.0
        %364 = vmatpush1.msra.mxu0 0.0
        %365 = vmatprep.subr.mxu0 0.0
        %366 = vmatpush1.msra.mxu0 0.0
        %367 = vmatprep.subr.mxu0 0.0
        %368 = vmatpush1.msra.mxu0 0.0
        %369 = vmatprep.subr.mxu0 0.0
        %370 = vmatpush1.msra.mxu0 0.0
        %371 = vmatprep.subr.mxu0 0.0
        %372 = vmatpush1.msra.mxu0 0.0
        %373 = vmatprep.subr.mxu0 0.0
        %374 = vmatpush1.msra.mxu0 0.0
        %375 = vmatprep.subr.mxu0 0.0
        %376 = vmatpush1.msra.mxu0 0.0
        %377 = vmatprep.subr.mxu0 0.0
        %378 = vmatpush1.msra.mxu0 0.0
        %379 = vmatprep.subr.mxu0 0.0
        %380 = vmatpush1.msra.mxu0 0.0
        %381 = vmatprep.subr.mxu0 0.0
        %382 = vmatpush1.msra.mxu0 0.0
        %383 = vmatprep.mubr.f32.mxu0 0.0
        %384 = vmatmul.mubr.f32.gmra.mrb[0].mxu0 %v271
        %v385 = vpop.f32.mrb[0].mxu0
        %v386 = vadd.f32 0.0, %v385
        %v387 = vpop.f32.mrb[0].mxu0
        %388 = vmatprep.mubr.f32.mxu0 0.0
        %389 = vmatmul.mubr.f32.gmra.mrb[0].mxu0 %v272
        %v390 = vpop.f32.mrb[0].mxu0
        %v391 = vadd.f32 0.0, %v390
        %v392 = vpop.f32.mrb[0].mxu0
        %393 = vmatprep.mubr.f32.mxu0 0.0
        %394 = vmatmul.mubr.f32.gmra.mrb[0].mxu0 %v273
        %v395 = vpop.f32.mrb[0].mxu0
        %v396 = vadd.f32 0.0, %v395
        %v397 = vpop.f32.mrb[0].mxu0
        %398 = vmatprep.mubr.f32.mxu0 0.0
        %399 = vmatmul.mubr.f32.gmra.mrb[0].mxu0 %v274
        %v400 = vpop.f32.mrb[0].mxu0
        %v401 = vadd.f32 0.0, %v400
        %v402 = vpop.f32.mrb[0].mxu0
        %403 = vmatprep.mubr.f32.mxu0 0.0
        %404 = vmatmul.mubr.f32.gmra.mrb[0].mxu0 %v275
        %v405 = vpop.f32.mrb[0].mxu0
        %v406 = vadd.f32 0.0, %v405
        %v407 = vpop.f32.mrb[0].mxu0
        %408 = vmatprep.mubr.f32.mxu0 0.0
        %409 = vmatmul.mubr.f32.gmra.mrb[0].mxu0 %v276
        %v410 = vpop.f32.mrb[0].mxu0
        %v411 = vadd.f32 0.0, %v410
        %v412 = vpop.f32.mrb[0].mxu0
        %413 = vmatprep.mubr.f32.mxu0 0.0
        %414 = vmatmul.mubr.f32.gmra.mrb[0].mxu0 %v277
        %v415 = vpop.f32.mrb[0].mxu0
        %v416 = vadd.f32 0.0, %v415
        %v417 = vpop.f32.mrb[0].mxu0
        %418 = vmatprep.mubr.f32.mxu0 0.0
        %419 = vmatmul.mubr.f32.gmra.mrb[0].mxu0 %v278
        %v420 = vpop.f32.mrb[0].mxu0
        %v421 = vadd.f32 0.0, %v420
        %v422 = vpop.f32.mrb[0].mxu0
        %423 = vmatprep.mubr.f32.mxu0 0.0
        %424 = vmatmul.mubr.f32.gmra.mrb[0].mxu0 %v279
        %v425 = vpop.f32.mrb[0].mxu0
        %v426 = vadd.f32 0.0, %v425
        %v427 = vpop.f32.mrb[0].mxu0
        %428 = vmatprep.mubr.f32.mxu0 0.0
        %429 = vmatmul.mubr.f32.gmra.mrb[0].mxu0 %v280
        %v430 = vpop.f32.mrb[0].mxu0
        %v431 = vadd.f32 0.0, %v430
        %v432 = vpop.f32.mrb[0].mxu0
        %433 = vmatprep.mubr.f32.mxu0 0.0
        %434 = vmatmul.mubr.f32.gmra.mrb[0].mxu0 %v281
        %v435 = vpop.f32.mrb[0].mxu0
        %v436 = vadd.f32 0.0, %v435
        %v437 = vpop.f32.mrb[0].mxu0
        %438 = vmatprep.mubr.f32.mxu0 0.0
        %439 = vmatmul.mubr.f32.gmra.mrb[0].mxu0 %v282
        %v440 = vpop.f32.mrb[0].mxu0
        %v441 = vadd.f32 0.0, %v440
        %v442 = vpop.f32.mrb[0].mxu0
        %443 = vmatprep.mubr.f32.mxu0 0.0
        %444 = vmatmul.mubr.f32.gmra.mrb[0].mxu0 %v283
        %v445 = vpop.f32.mrb[0].mxu0
        %v446 = vadd.f32 0.0, %v445
        %v447 = vpop.f32.mrb[0].mxu0
        %448 = vmatprep.mubr.f32.mxu0 0.0
        %449 = vmatmul.mubr.f32.gmra.mrb[0].mxu0 %v284
        %v450 = vpop.f32.mrb[0].mxu0
        %v451 = vadd.f32 0.0, %v450
        %v452 = vpop.f32.mrb[0].mxu0
        %453 = vmatprep.mubr.f32.mxu0 0.0
        %454 = vmatmul.mubr.f32.gmra.mrb[0].mxu0 %v285
        %v455 = vpop.f32.mrb[0].mxu0
        %v456 = vadd.f32 0.0, %v455
        %v457 = vpop.f32.mrb[0].mxu0
        %458 = vmatprep.mubr.f32.mxu0 0.0
        %459 = vmatmul.mubr.f32.gmra.mrb[0].mxu0 %v286
        %v460 = vpop.f32.mrb[0].mxu0
        %v461 = vadd.f32 0.0, %v460
        %v462 = vpop.f32.mrb[0].mxu0
        %463 = vmatprep.mubr.f32.mxu0 0.0
        %464 = vmatmul.mubr.f32.gmra.mrb[0].mxu0 %v287
        %v465 = vpop.f32.mrb[0].mxu0
        %v466 = vadd.f32 0.0, %v465
        %v467 = vpop.f32.mrb[0].mxu0
        %468 = vmatprep.mubr.f32.mxu0 0.0
        %469 = vmatmul.mubr.f32.gmra.mrb[0].mxu0 %v288
        %v470 = vpop.f32.mrb[0].mxu0
        %v471 = vadd.f32 0.0, %v470
        %v472 = vpop.f32.mrb[0].mxu0
        %473 = vmatprep.mubr.f32.mxu0 0.0
        %474 = vmatmul.mubr.f32.gmra.mrb[0].mxu0 %v289
        %v475 = vpop.f32.mrb[0].mxu0
        %v476 = vadd.f32 0.0, %v475
        %v477 = vpop.f32.mrb[0].mxu0
        %478 = vmatprep.mubr.f32.mxu0 0.0
        %479 = vmatmul.mubr.f32.gmra.mrb[0].mxu0 %v290
        %v480 = vpop.f32.mrb[0].mxu0
        %v481 = vadd.f32 0.0, %v480
        %v482 = vpop.f32.mrb[0].mxu0
        %483 = vmatprep.mubr.f32.mxu0 0.0
        %484 = vmatmul.mubr.f32.gmra.mrb[0].mxu0 %v291
        %v485 = vpop.f32.mrb[0].mxu0
        %v486 = vadd.f32 0.0, %v485
        %v487 = vpop.f32.mrb[0].mxu0
        %488 = vmatprep.mubr.f32.mxu0 0.0
        %489 = vmatmul.mubr.f32.gmra.mrb[0].mxu0 %v292
        %v490 = vpop.f32.mrb[0].mxu0
        %v491 = vadd.f32 0.0, %v490
        %v492 = vpop.f32.mrb[0].mxu0
        %493 = vmatprep.mubr.f32.mxu0 0.0
        %494 = vmatmul.mubr.f32.gmra.mrb[0].mxu0 %v293
        %v495 = vpop.f32.mrb[0].mxu0
        %v496 = vadd.f32 0.0, %v495
        %v497 = vpop.f32.mrb[0].mxu0
        %498 = vmatprep.mubr.f32.mxu0 0.0
        %499 = vmatmul.mubr.f32.gmra.mrb[0].mxu0 %v294
        %v500 = vpop.f32.mrb[0].mxu0
        %v501 = vadd.f32 0.0, %v500
        %v502 = vpop.f32.mrb[0].mxu0
        %503 = vmatprep.mubr.f32.mxu0 0.0
        %504 = vmatmul.mubr.f32.gmra.mrb[0].mxu0 %v295
        %v505 = vpop.f32.mrb[0].mxu0
        %v506 = vadd.f32 0.0, %v505
        %v507 = vpop.f32.mrb[0].mxu0
        %508 = vmatprep.mubr.f32.mxu0 0.0
        %509 = vmatmul.mubr.f32.gmra.mrb[0].mxu0 %v296
        %v510 = vpop.f32.mrb[0].mxu0
        %v511 = vadd.f32 0.0, %v510
        %v512 = vpop.f32.mrb[0].mxu0
        %513 = vmatprep.mubr.f32.mxu0 0.0
        %514 = vmatmul.mubr.f32.gmra.mrb[0].mxu0 %v297
        %v515 = vpop.f32.mrb[0].mxu0
        %v516 = vadd.f32 0.0, %v515
        %v517 = vpop.f32.mrb[0].mxu0
        %518 = vmatprep.mubr.f32.mxu0 0.0
        %519 = vmatmul.mubr.f32.gmra.mrb[0].mxu0 %v298
        %v520 = vpop.f32.mrb[0].mxu0
        %v521 = vadd.f32 0.0, %v520
        %v522 = vpop.f32.mrb[0].mxu0
        %523 = vmatprep.mubr.f32.mxu0 0.0
        %524 = vmatmul.mubr.f32.gmra.mrb[0].mxu0 %v299
        %v525 = vpop.f32.mrb[0].mxu0
        %v526 = vadd.f32 0.0, %v525
        %v527 = vpop.f32.mrb[0].mxu0
        %528 = vmatprep.mubr.f32.mxu0 0.0
        %529 = vmatmul.mubr.f32.gmra.mrb[0].mxu0 %v300
        %v530 = vpop.f32.mrb[0].mxu0
        %v531 = vadd.f32 0.0, %v530
        %v532 = vpop.f32.mrb[0].mxu0
        %533 = vmatprep.mubr.f32.mxu0 0.0
        %534 = vmatmul.mubr.f32.gmra.mrb[0].mxu0 %v301
        %v535 = vpop.f32.mrb[0].mxu0
        %v536 = vadd.f32 0.0, %v535
        %v537 = vpop.f32.mrb[0].mxu0
        %538 = vmatprep.mubr.f32.mxu0 0.0
        %539 = vmatmul.mubr.f32.gmra.mrb[0].mxu0 %v302
        %v540 = vpop.f32.mrb[0].mxu0
        %v541 = vadd.f32 0.0, %v540
        %v542 = vpop.f32.mrb[0].mxu0
        %543 = vdwg.mxu0
        %v544 = vadd.f32 %v386, %v391
        %v545 = vadd.f32 %v544, %v396
        %v546 = vadd.f32 %v545, %v401
        %v547 = vadd.f32 %v546, %v406
        %v548 = vadd.f32 %v547, %v411
        %v549 = vadd.f32 %v548, %v416
        %v550 = vadd.f32 %v549, %v421
        %v551 = vadd.f32 %v550, %v426
        %v552 = vadd.f32 %v551, %v431
        %v553 = vadd.f32 %v552, %v436
        %v554 = vadd.f32 %v553, %v441
        %v555 = vadd.f32 %v554, %v446
        %v556 = vadd.f32 %v555, %v451
        %v557 = vadd.f32 %v556, %v456
        %v558 = vadd.f32 %v557, %v461
        %v559 = vadd.f32 %v558, %v466
        %v560 = vadd.f32 %v559, %v471
        %v561 = vadd.f32 %v560, %v476
        %v562 = vadd.f32 %v561, %v481
        %v563 = vadd.f32 %v562, %v486
        %v564 = vadd.f32 %v563, %v491
        %v565 = vadd.f32 %v564, %v496
        %v566 = vadd.f32 %v565, %v501
        %v567 = vadd.f32 %v566, %v506
        %v568 = vadd.f32 %v567, %v511
        %v569 = vadd.f32 %v568, %v516
        %v570 = vadd.f32 %v569, %v521
        %v571 = vadd.f32 %v570, %v526
        %v572 = vadd.f32 %v571, %v531
        %v573 = vadd.f32 %v572, %v536
        %v574 = vadd.f32 %v573, %v541
        %v575 = vrot.slane %v574, 4
        %v576 = vadd.f32 %v574, %v575
        %v577 = vrot.slane %v576, 2
        %v578 = vadd.f32 %v576, %v577
        %v579 = vrot.slane %v578, 1
        %v580 = vadd.f32 %v578, %v579
        %581 = vst [vmem:[%s262] sm:$0x1] %v580
        %v582 = vmul.f32 %v386, %v386
        %v583 = vmul.f32 %v391, %v391
        %v584 = vmul.f32 %v396, %v396
        %v585 = vmul.f32 %v401, %v401
        %v586 = vmul.f32 %v406, %v406
        %v587 = vmul.f32 %v411, %v411
        %v588 = vmul.f32 %v416, %v416
        %v589 = vmul.f32 %v421, %v421
        %v590 = vmul.f32 %v426, %v426
        %v591 = vmul.f32 %v431, %v431
        %v592 = vmul.f32 %v436, %v436
        %v593 = vmul.f32 %v441, %v441
        %v594 = vmul.f32 %v446, %v446
        %v595 = vmul.f32 %v451, %v451
        %v596 = vmul.f32 %v456, %v456
        %v597 = vmul.f32 %v461, %v461
        %v598 = vmul.f32 %v466, %v466
        %v599 = vmul.f32 %v471, %v471
        %v600 = vmul.f32 %v476, %v476
        %v601 = vmul.f32 %v481, %v481
        %v602 = vmul.f32 %v486, %v486
        %v603 = vmul.f32 %v491, %v491
        %v604 = vmul.f32 %v496, %v496
        %v605 = vmul.f32 %v501, %v501
        %v606 = vmul.f32 %v506, %v506
        %v607 = vmul.f32 %v511, %v511
        %v608 = vmul.f32 %v516, %v516
        %v609 = vmul.f32 %v521, %v521
        %v610 = vmul.f32 %v526, %v526
        %v611 = vmul.f32 %v531, %v531
        %v612 = vmul.f32 %v536, %v536
        %v613 = vmul.f32 %v541, %v541
        %v614 = vadd.f32 %v582, %v583
        %v615 = vadd.f32 %v614, %v584
        %v616 = vadd.f32 %v615, %v585
        %v617 = vadd.f32 %v616, %v586
        %v618 = vadd.f32 %v617, %v587
        %v619 = vadd.f32 %v618, %v588
        %v620 = vadd.f32 %v619, %v589
        %v621 = vadd.f32 %v620, %v590
        %v622 = vadd.f32 %v621, %v591
        %v623 = vadd.f32 %v622, %v592
        %v624 = vadd.f32 %v623, %v593
        %v625 = vadd.f32 %v624, %v594
        %v626 = vadd.f32 %v625, %v595
        %v627 = vadd.f32 %v626, %v596
        %v628 = vadd.f32 %v627, %v597
        %v629 = vadd.f32 %v628, %v598
        %v630 = vadd.f32 %v629, %v599
        %v631 = vadd.f32 %v630, %v600
        %v632 = vadd.f32 %v631, %v601
        %v633 = vadd.f32 %v632, %v602
        %v634 = vadd.f32 %v633, %v603
        %v635 = vadd.f32 %v634, %v604
        %v636 = vadd.f32 %v635, %v605
        %v637 = vadd.f32 %v636, %v606
        %v638 = vadd.f32 %v637, %v607
        %v639 = vadd.f32 %v638, %v608
        %v640 = vadd.f32 %v639, %v609
        %v641 = vadd.f32 %v640, %v610
        %v642 = vadd.f32 %v641, %v611
        %v643 = vadd.f32 %v642, %v612
        %v644 = vadd.f32 %v643, %v613
        %v645 = vrot.slane %v644, 4
        %v646 = vadd.f32 %v644, %v645
        %v647 = vrot.slane %v646, 2
        %v648 = vadd.f32 %v646, %v647
        %v649 = vrot.slane %v648, 1
        %v650 = vadd.f32 %v648, %v649
        %651 = vst [vmem:[%s268] sm:$0x1] %v650
        %652 = vxpose.xlu0.b32.start [1/16] %v386, 128
        %653 = vxpose.xlu0.b32.cont [2/16] %v391, 128
        %654 = vxpose.xlu0.b32.cont [3/16] %v396, 128
        %655 = vxpose.xlu0.b32.cont [4/16] %v401, 128
        %656 = vxpose.xlu0.b32.cont [5/16] %v406, 128
        %657 = vxpose.xlu0.b32.cont [6/16] %v411, 128
        %658 = vxpose.xlu0.b32.cont [7/16] %v416, 128
        %659 = vxpose.xlu0.b32.cont [8/16] %v421, 128
        %660 = vxpose.xlu0.b32.cont [9/16] %v426, 128
        %661 = vxpose.xlu0.b32.cont [10/16] %v431, 128
        %662 = vxpose.xlu0.b32.cont [11/16] %v436, 128
        %663 = vxpose.xlu0.b32.cont [12/16] %v441, 128
        %664 = vxpose.xlu0.b32.cont [13/16] %v446, 128
        %665 = vxpose.xlu0.b32.cont [14/16] %v451, 128
        %666 = vxpose.xlu0.b32.cont [15/16] %v456, 128
        %667 = vxpose.xlu0.b32.end [16/16] %v461, 128
        %v668 = vpop.trf.xlu0
        %v669 = vpop.trf.xlu0
        %v670 = vpop.trf.xlu0
        %v671 = vpop.trf.xlu0
        %v672 = vpop.trf.xlu0
        %v673 = vpop.trf.xlu0
        %v674 = vpop.trf.xlu0
        %v675 = vpop.trf.xlu0
        %v676 = vpop.trf.xlu0
        %v677 = vpop.trf.xlu0
        %v678 = vpop.trf.xlu0
        %v679 = vpop.trf.xlu0
        %v680 = vpop.trf.xlu0
        %v681 = vpop.trf.xlu0
        %v682 = vpop.trf.xlu0
        %v683 = vpop.trf.xlu0
        %684 = vxpose.xlu0.b32.start [1/16] %v466, 128
        %685 = vxpose.xlu0.b32.cont [2/16] %v471, 128
        %686 = vxpose.xlu0.b32.cont [3/16] %v476, 128
        %687 = vxpose.xlu0.b32.cont [4/16] %v481, 128
        %688 = vxpose.xlu0.b32.cont [5/16] %v486, 128
        %689 = vxpose.xlu0.b32.cont [6/16] %v491, 128
        %690 = vxpose.xlu0.b32.cont [7/16] %v496, 128
        %691 = vxpose.xlu0.b32.cont [8/16] %v501, 128
        %692 = vxpose.xlu0.b32.cont [9/16] %v506, 128
        %693 = vxpose.xlu0.b32.cont [10/16] %v511, 128
        %694 = vxpose.xlu0.b32.cont [11/16] %v516, 128
        %695 = vxpose.xlu0.b32.cont [12/16] %v521, 128
        %696 = vxpose.xlu0.b32.cont [13/16] %v526, 128
        %697 = vxpose.xlu0.b32.cont [14/16] %v531, 128
        %698 = vxpose.xlu0.b32.cont [15/16] %v536, 128
        %699 = vxpose.xlu0.b32.end [16/16] %v541, 128
        %v700 = vpop.trf.xlu0
        %v701 = vpop.trf.xlu0
        %v702 = vpop.trf.xlu0
        %v703 = vpop.trf.xlu0
        %v704 = vpop.trf.xlu0
        %v705 = vpop.trf.xlu0
        %v706 = vpop.trf.xlu0
        %v707 = vpop.trf.xlu0
        %v708 = vpop.trf.xlu0
        %v709 = vpop.trf.xlu0
        %v710 = vpop.trf.xlu0
        %v711 = vpop.trf.xlu0
        %v712 = vpop.trf.xlu0
        %v713 = vpop.trf.xlu0
        %v714 = vpop.trf.xlu0
        %v715 = vpop.trf.xlu0
        %716 = vst [vmem:[%s256] sm:$0xff] %v668
        %717 = vst [vmem:[%s256 + $0x8] sm:$0xff] %v700
        %s718 = sand.u32 %s97, 1
        %s719 = scalar_lea.sflag [#allocation4], %s718
        %s720 = sand.u32 %s97, 1
        %s721 = smul.addr %s720, 16
        %s722 = scalar_lea.vmem [#allocation7], %s721
        %s723 = sand.u32 %s26, 1
        %s724 = scalar_lea.sflag [#allocation9], %s723
        %s725 = sand.u32 %s125, 1
        %s726 = scalar_lea.vmem [#allocation8], %s725
        %s727 = sand.u32 %s26, 1
        %s728 = scalar_lea.sflag [#allocation9], %s727
        %s729 = sand.u32 %s153, 1
        %s730 = scalar_lea.vmem [#allocation10], %s729
        // Predicated region
        $region37: #{tpu_custom_call.1} parent=27 // pred_check
          %p731 = pneg %p107
        $region38: #{tpu_custom_call.1} parent=27 // pred_check_branch
          %733 = sbr.rel (%p731) target = $region40
        $region39: #{tpu_custom_call.1} parent=27 // pred_region
          %s734 = smul.u32 2, %s31
          %s736 = ssub.s32 256, 256
          %737 = vsyncadd %s719, %s736
          %s738 = smul.addr %s30, 2
          %s739 = sadd.s32 %s734, %s738
          %s740 = smul.addr %s739, 128
          %s741 = scalar_lea.hbm %s2, %s740
          %s743 = sshll.u32 %s722, 4
          %s744 = int_to_ptr.vmem [resolvable:$true] %s743
          %746 = dma.vmem_to_hbm [thread:$0]  %s744, 256, %s741, %s719
        $region40: #{tpu_custom_call.1} parent=27 // pred_fallthru
          _
        // Predicated region
        $region41: #{tpu_custom_call.1} parent=27 // pred_check
          %p747 = pneg %p135
        $region42: #{tpu_custom_call.1} parent=27 // pred_check_branch
          %749 = sbr.rel (%p747) target = $region44
        $region43: #{tpu_custom_call.1} parent=27 // pred_region
          %s751 = ssub.s32 16, 16
          %752 = vsyncadd %s724, %s751
          %s753 = sadd.s32 %s31, %s30
          %s754 = smul.addr %s753, 16
          %s755 = scalar_lea.hbm %s3, %s754
          %s757 = sshll.u32 %s726, 4
          %s758 = int_to_ptr.vmem [resolvable:$true] %s757
          %760 = dma.vmem_to_hbm [thread:$0]  %s758, 16, %s755, %s724
        $region44: #{tpu_custom_call.1} parent=27 // pred_fallthru
          _
        // Predicated region
        $region45: #{tpu_custom_call.1} parent=27 // pred_check
          %p761 = pneg %p163
        $region46: #{tpu_custom_call.1} parent=27 // pred_check_branch
          %763 = sbr.rel (%p761) target = $region48
        $region47: #{tpu_custom_call.1} parent=27 // pred_region
          %s765 = ssub.s32 16, 16
          %766 = vsyncadd %s728, %s765
          %s767 = sadd.s32 %s31, %s30
          %s768 = smul.addr %s767, 16
          %s769 = scalar_lea.hbm %s4, %s768
          %s771 = sshll.u32 %s730, 4
          %s772 = int_to_ptr.vmem [resolvable:$true] %s771
          %774 = dma.vmem_to_hbm [thread:$0]  %s772, 16, %s769, %s728
        $region48: #{tpu_custom_call.1} parent=27 // pred_fallthru
          _
      $region28: #{tpu_custom_call.1} parent=5 // pred_fallthru
        _
      %p775 = scmp.le.s32.totalorder 2, %s21
      // Predicated region
      $region49: #{tpu_custom_call.1} parent=5 // pred_check
        %p776 = pneg %p775
      $region50: #{tpu_custom_call.1} parent=5 // pred_check_branch
        %778 = sbr.rel (%p776) target = $region52
      $region51: #{tpu_custom_call.1} parent=5 // pred_region
        %s779 = ssub.s32 %s21, 2
        // Predicated region
        $region53: #{tpu_custom_call.1} parent=51 // pred_check
          %p780 = pneg %p113
        $region54: #{tpu_custom_call.1} parent=51 // pred_check_branch
          %782 = sbr.rel (%p780) target = $region56
        $region55: #{tpu_custom_call.1} parent=51 // pred_region
          %s783 = sand.u32 %s98, 1
          %s784 = scalar_lea.sflag [#allocation4], %s783
          %s785 = sand.u32 %s98, 1
          %s786 = smul.addr %s785, 16
          %s787 = scalar_lea.vmem [#allocation7], %s786
          %788 = dma.done %s784, 256
        $region56: #{tpu_custom_call.1} parent=51 // pred_fallthru
          _
        // Predicated region
        $region57: #{tpu_custom_call.1} parent=51 // pred_check
          %p789 = pneg %p141
        $region58: #{tpu_custom_call.1} parent=51 // pred_check_branch
          %791 = sbr.rel (%p789) target = $region60
        $region59: #{tpu_custom_call.1} parent=51 // pred_region
          %s792 = sand.u32 %s27, 1
          %s793 = scalar_lea.sflag [#allocation9], %s792
          %s794 = sand.u32 %s126, 1
          %s795 = scalar_lea.vmem [#allocation8], %s794
          %796 = dma.done %s793, 16
        $region60: #{tpu_custom_call.1} parent=51 // pred_fallthru
          _
        // Predicated region
        $region61: #{tpu_custom_call.1} parent=51 // pred_check
          %p797 = pneg %p169
        $region62: #{tpu_custom_call.1} parent=51 // pred_check_branch
          %799 = sbr.rel (%p797) target = $region64
        $region63: #{tpu_custom_call.1} parent=51 // pred_region
          %s800 = sand.u32 %s27, 1
          %s801 = scalar_lea.sflag [#allocation9], %s800
          %s802 = sand.u32 %s154, 1
          %s803 = scalar_lea.vmem [#allocation10], %s802
          %804 = dma.done %s801, 16
        $region64: #{tpu_custom_call.1} parent=51 // pred_fallthru
          _
      $region52: #{tpu_custom_call.1} parent=5 // pred_fallthru
        _
    $region6: #{tpu_custom_call.1} parent=1 // loop_footer
      %s25 = sadd.s32 1, %s21
    $region7: #{tpu_custom_call.1} parent=1 // loop_footer_branch
      %20 = sbr.rel target = $region3
    $region8: #{tpu_custom_call.1} parent=1 // loop_exit
      _
    %805 = vsyncpa [#allocation3], 1
    %s806 = scalar_lea.sflag [#allocation3], 1
    %807 = vsyncpa %s806, 1
    %808 = vsyncpa [#allocation6], 1
    %809 = vsyncpa [#allocation4], 1
    %s810 = scalar_lea.sflag [#allocation4], 1
    %811 = vsyncpa %s810, 1
    %812 = vsyncpa [#allocation9], 1
    %s813 = scalar_lea.sflag [#allocation9], 1
    %814 = vsyncpa %s813, 1

</llo_original>
